<compile_context>
chip_gen: v7x
topology: tpu7x:2x2x1
jax: 0.10.0
libtpu: 0.0.40
codegen_flags: <defaults>
</compile_context>

<pallas_src>
import jax
import jax.numpy as jnp
from jax.experimental import pallas as pl
from jax.experimental.pallas import tpu as pltpu

INPUT_SIZE = 49
LAYER_1 = 64
LAYER_2 = 32
LAYER_3 = 16
NUM_CLASSES = 30

DEFAULT_TILE_B = 4096


def _round_up(x, m):
    return ((x + m - 1) // m) * m


def _choose_tile_b(B, tile_batch):
    """Pick the batch tile size.

    Small batches: one full-batch block (block dims == array dims -> legal).
    Large batches: at least 2 grid steps (v7x megacore) with a sublane-aligned
    tile, capped at `tile_batch`.
    """
    if B <= 512:
        return B
    half = _round_up(-(-B // 2), 8)
    return min(tile_batch, half)


def _mlp_kernel(x_ref, w1_ref, b1_ref, w2_ref, b2_ref,
                w3_ref, b3_ref, w4_ref, b4_ref, o_ref):
    # All matmuls run bf16 x bf16 on the MXU with f32 accumulation; activations
    # stay in vregs/VMEM so the bf16 re-casts cost no HBM traffic.
    h = jnp.dot(x_ref[...], w1_ref[...], preferred_element_type=jnp.float32)
    h = jnp.maximum(h + b1_ref[...], 0.0).astype(jnp.bfloat16)     # layer_input + ReLU
    h = jnp.dot(h, w2_ref[...], preferred_element_type=jnp.float32)
    h = jnp.maximum(h + b2_ref[...], 0.0).astype(jnp.bfloat16)     # layer_hidden_one + ReLU
    h = jnp.dot(h, w3_ref[...], preferred_element_type=jnp.float32)
    h = jnp.maximum(h + b3_ref[...], 0.0).astype(jnp.bfloat16)     # layer_hidden_two + ReLU
    h = jnp.dot(h, w4_ref[...], preferred_element_type=jnp.float32)
    o_ref[...] = (h + b4_ref[...]).astype(o_ref.dtype)             # layer_output


def net_relu_forward(x, params, *, tile_batch=DEFAULT_TILE_B):
    """x: (B, 49); params: dict of (in,out) weights and (1,out) biases."""
    B, F = x.shape
    assert F == INPUT_SIZE

    # bf16 matmul inputs (halves x-side HBM read bytes; MXU-native path).
    x_bf = x.astype(jnp.bfloat16)
    w1 = params["w1"].astype(jnp.bfloat16)
    w2 = params["w2"].astype(jnp.bfloat16)
    w3 = params["w3"].astype(jnp.bfloat16)
    w4 = params["w4"].astype(jnp.bfloat16)
    b1 = params["b1"].astype(jnp.float32)
    b2 = params["b2"].astype(jnp.float32)
    b3 = params["b3"].astype(jnp.float32)
    b4 = params["b4"].astype(jnp.float32)

    tb = _choose_tile_b(B, tile_batch)
    grid = (pl.cdiv(B, tb),)

    def const_spec(arr):
        # Weights/biases: full-array block, constant index -> DMA'd once.
        return pl.BlockSpec(arr.shape, lambda i: (0, 0))

    flops = 2 * B * (INPUT_SIZE * LAYER_1 + LAYER_1 * LAYER_2
                     + LAYER_2 * LAYER_3 + LAYER_3 * NUM_CLASSES)
    weight_bytes = (2 * (INPUT_SIZE * LAYER_1 + LAYER_1 * LAYER_2
                         + LAYER_2 * LAYER_3 + LAYER_3 * NUM_CLASSES)
                    + 4 * (LAYER_1 + LAYER_2 + LAYER_3 + NUM_CLASSES))
    bytes_accessed = 2 * B * INPUT_SIZE + 4 * B * NUM_CLASSES + weight_bytes

    out = pl.pallas_call(
        _mlp_kernel,
        out_shape=jax.ShapeDtypeStruct((B, NUM_CLASSES), jnp.float32),
        grid_spec=pltpu.PrefetchScalarGridSpec(
            num_scalar_prefetch=0,
            grid=grid,
            in_specs=[
                pl.BlockSpec((tb, INPUT_SIZE), lambda i: (i, 0)),  # x tile (ragged last tile OK)
                const_spec(w1), const_spec(b1),
                const_spec(w2), const_spec(b2),
                const_spec(w3), const_spec(b3),
                const_spec(w4), const_spec(b4),
            ],
            out_specs=pl.BlockSpec((tb, NUM_CLASSES), lambda i: (i, 0)),
        ),
        compiler_params=pltpu.CompilerParams(
            dimension_semantics=("parallel",),     # megacore sharding on v7x
        ),
        cost_estimate=pl.CostEstimate(
            flops=flops, transcendentals=0, bytes_accessed=bytes_accessed),
    )(x_bf, w1, b1, w2, b2, w3, b3, w4, b4)
    return out


def init_params(key):
    """Deterministic init mimicking nn.Linear's U(-1/sqrt(fan_in), 1/sqrt(fan_in))."""
    dims = [(INPUT_SIZE, LAYER_1), (LAYER_1, LAYER_2),
            (LAYER_2, LAYER_3), (LAYER_3, NUM_CLASSES)]
    params = {}
    keys = jax.random.split(key, 2 * len(dims))
    for i, (fan_in, fan_out) in enumerate(dims):
        bound = 1.0 / (fan_in ** 0.5)
        params[f"w{i+1}"] = jax.random.uniform(
            keys[2 * i], (fan_in, fan_out), jnp.float32, -bound, bound)
        params[f"b{i+1}"] = jax.random.uniform(
            keys[2 * i + 1], (1, fan_out), jnp.float32, -bound, bound)
    return params


def _reference_forward(x, p):
    """Pure f32 JAX reference of the PyTorch module."""
    h = jnp.maximum(x @ p["w1"] + p["b1"], 0.0)
    h = jnp.maximum(h @ p["w2"] + p["b2"], 0.0)
    h = jnp.maximum(h @ p["w3"] + p["b3"], 0.0)
    return h @ p["w4"] + p["b4"]


if __name__ == "__main__":
    key = jax.random.PRNGKey(0)
    k_x, k_p = jax.random.split(key)
    params = init_params(k_p)

    # Small-batch path: single full-batch block.
    batch = 8
    x = jax.random.normal(k_x, (batch, INPUT_SIZE), jnp.float32)
    out = jax.block_until_ready(net_relu_forward(x, params))
    ref = _reference_forward(x, params)
    assert out.shape == (batch, NUM_CLASSES)
    # bf16 matmul inputs with f32 accumulation -> loosened tolerance vs f32 ref.
    assert jnp.allclose(out, ref, atol=5e-2, rtol=5e-2)

    # Tiled path: >=2 grid steps and a ragged last tile (B=1030 -> tb=520).
    big_b = 1030
    xb = jax.random.normal(k_x, (big_b, INPUT_SIZE), jnp.float32)
    out_b = jax.block_until_ready(net_relu_forward(xb, params))
    ref_b = _reference_forward(xb, params)
    assert out_b.shape == (big_b, NUM_CLASSES)
    assert jnp.allclose(out_b, ref_b, atol=5e-2, rtol=5e-2)
    assert bool(jnp.all(jnp.isfinite(out_b)))

    print("KERNEL_OK")
</pallas_src>

<mosaic_0001>
module attributes {stable_mosaic.version = 11 : i64} {
  func.func @_mlp_kernel(%arg0: i32, %arg1: memref<8x49xbf16, #tpu.memory_space<vmem>>, %arg2: memref<49x64xbf16, #tpu.memory_space<vmem>>, %arg3: memref<1x64xf32, #tpu.memory_space<vmem>>, %arg4: memref<64x32xbf16, #tpu.memory_space<vmem>>, %arg5: memref<1x32xf32, #tpu.memory_space<vmem>>, %arg6: memref<32x16xbf16, #tpu.memory_space<vmem>>, %arg7: memref<1x16xf32, #tpu.memory_space<vmem>>, %arg8: memref<16x30xbf16, #tpu.memory_space<vmem>>, %arg9: memref<1x30xf32, #tpu.memory_space<vmem>>, %arg10: memref<8x30xf32, #tpu.memory_space<vmem>>) attributes {dimension_semantics = [#tpu.dimension_semantics<parallel>], iteration_bounds = array<i64: 1>, scalar_prefetch = 0 : i64, scratch_operands = 0 : i64, tpu.core_type = #tpu.core_type<tc>, window_params = [{transform_indices = @transform_0, window_bounds = array<i64: 8, 49>}, {pipeline_mode = #tpu.pipeline_mode<synchronous>, transform_indices = @transform_1, window_bounds = array<i64: 49, 64>}, {pipeline_mode = #tpu.pipeline_mode<synchronous>, transform_indices = @transform_2, window_bounds = array<i64: 1, 64>}, {pipeline_mode = #tpu.pipeline_mode<synchronous>, transform_indices = @transform_3, window_bounds = array<i64: 64, 32>}, {pipeline_mode = #tpu.pipeline_mode<synchronous>, transform_indices = @transform_4, window_bounds = array<i64: 1, 32>}, {pipeline_mode = #tpu.pipeline_mode<synchronous>, transform_indices = @transform_5, window_bounds = array<i64: 32, 16>}, {pipeline_mode = #tpu.pipeline_mode<synchronous>, transform_indices = @transform_6, window_bounds = array<i64: 1, 16>}, {pipeline_mode = #tpu.pipeline_mode<synchronous>, transform_indices = @transform_7, window_bounds = array<i64: 16, 30>}, {pipeline_mode = #tpu.pipeline_mode<synchronous>, transform_indices = @transform_8, window_bounds = array<i64: 1, 30>}, {transform_indices = @transform_9, window_bounds = array<i64: 8, 30>}]} {
    %c0 = arith.constant 0 : index
    %c0_0 = arith.constant 0 : index
    %0 = vector.load %arg1[%c0, %c0_0] : memref<8x49xbf16, #tpu.memory_space<vmem>>, vector<8x49xbf16>
    %c0_1 = arith.constant 0 : index
    %c0_2 = arith.constant 0 : index
    %1 = vector.load %arg2[%c0_1, %c0_2] : memref<49x64xbf16, #tpu.memory_space<vmem>>, vector<49x64xbf16>
    %cst = arith.constant dense<0.000000e+00> : vector<8x64xf32>
    %2 = tpu.matmul %0, %1, %cst {dimension_numbers = #tpu.dot_dimension_numbers<[1], [0], [0], [1], [0, 0, 1, 1], [], []>} : vector<8x49xbf16>, vector<49x64xbf16>, vector<8x64xf32> -> vector<8x64xf32>
    %c0_3 = arith.constant 0 : index
    %c0_4 = arith.constant 0 : index
    %3 = vector.load %arg3[%c0_3, %c0_4] : memref<1x64xf32, #tpu.memory_space<vmem>>, vector<1x64xf32>
    %4 = vector.broadcast %3 : vector<1x64xf32> to vector<8x64xf32>
    %5 = arith.addf %2, %4 : vector<8x64xf32>
    %cst_5 = arith.constant 0.000000e+00 : f32
    %6 = vector.broadcast %cst_5 : f32 to vector<8x64xf32>
    %7 = arith.maximumf %5, %6 : vector<8x64xf32>
    %8 = arith.truncf %7 : vector<8x64xf32> to vector<8x64xbf16>
    %c0_6 = arith.constant 0 : index
    %c0_7 = arith.constant 0 : index
    %9 = vector.load %arg4[%c0_6, %c0_7] : memref<64x32xbf16, #tpu.memory_space<vmem>>, vector<64x32xbf16>
    %cst_8 = arith.constant dense<0.000000e+00> : vector<8x32xf32>
    %10 = tpu.matmul %8, %9, %cst_8 {dimension_numbers = #tpu.dot_dimension_numbers<[1], [0], [0], [1], [0, 0, 1, 1], [], []>} : vector<8x64xbf16>, vector<64x32xbf16>, vector<8x32xf32> -> vector<8x32xf32>
    %c0_9 = arith.constant 0 : index
    %c0_10 = arith.constant 0 : index
    %11 = vector.load %arg5[%c0_9, %c0_10] : memref<1x32xf32, #tpu.memory_space<vmem>>, vector<1x32xf32>
    %12 = vector.broadcast %11 : vector<1x32xf32> to vector<8x32xf32>
    %13 = arith.addf %10, %12 : vector<8x32xf32>
    %cst_11 = arith.constant 0.000000e+00 : f32
    %14 = vector.broadcast %cst_11 : f32 to vector<8x32xf32>
    %15 = arith.maximumf %13, %14 : vector<8x32xf32>
    %16 = arith.truncf %15 : vector<8x32xf32> to vector<8x32xbf16>
    %c0_12 = arith.constant 0 : index
    %c0_13 = arith.constant 0 : index
    %17 = vector.load %arg6[%c0_12, %c0_13] : memref<32x16xbf16, #tpu.memory_space<vmem>>, vector<32x16xbf16>
    %cst_14 = arith.constant dense<0.000000e+00> : vector<8x16xf32>
    %18 = tpu.matmul %16, %17, %cst_14 {dimension_numbers = #tpu.dot_dimension_numbers<[1], [0], [0], [1], [0, 0, 1, 1], [], []>} : vector<8x32xbf16>, vector<32x16xbf16>, vector<8x16xf32> -> vector<8x16xf32>
    %c0_15 = arith.constant 0 : index
    %c0_16 = arith.constant 0 : index
    %19 = vector.load %arg7[%c0_15, %c0_16] : memref<1x16xf32, #tpu.memory_space<vmem>>, vector<1x16xf32>
    %20 = vector.broadcast %19 : vector<1x16xf32> to vector<8x16xf32>
    %21 = arith.addf %18, %20 : vector<8x16xf32>
    %cst_17 = arith.constant 0.000000e+00 : f32
    %22 = vector.broadcast %cst_17 : f32 to vector<8x16xf32>
    %23 = arith.maximumf %21, %22 : vector<8x16xf32>
    %24 = arith.truncf %23 : vector<8x16xf32> to vector<8x16xbf16>
    %c0_18 = arith.constant 0 : index
    %c0_19 = arith.constant 0 : index
    %25 = vector.load %arg8[%c0_18, %c0_19] : memref<16x30xbf16, #tpu.memory_space<vmem>>, vector<16x30xbf16>
    %cst_20 = arith.constant dense<0.000000e+00> : vector<8x30xf32>
    %26 = tpu.matmul %24, %25, %cst_20 {dimension_numbers = #tpu.dot_dimension_numbers<[1], [0], [0], [1], [0, 0, 1, 1], [], []>} : vector<8x16xbf16>, vector<16x30xbf16>, vector<8x30xf32> -> vector<8x30xf32>
    %c0_21 = arith.constant 0 : index
    %c0_22 = arith.constant 0 : index
    %27 = vector.load %arg9[%c0_21, %c0_22] : memref<1x30xf32, #tpu.memory_space<vmem>>, vector<1x30xf32>
    %28 = vector.broadcast %27 : vector<1x30xf32> to vector<8x30xf32>
    %29 = arith.addf %26, %28 : vector<8x30xf32>
    %c0_23 = arith.constant 0 : index
    %c0_24 = arith.constant 0 : index
    %30 = vector.load %arg10[%c0_23, %c0_24] : memref<8x30xf32, #tpu.memory_space<vmem>>, vector<8x30xf32>
    tpu.vector_store %arg10[%c0_23, %c0_24], %29 {strides = array<i32>} : memref<8x30xf32, #tpu.memory_space<vmem>>, vector<8x30xf32>,
    return
  }
  func.func @transform_0(%arg0: i32) -> (i32, i32) {
    %c0_i32 = arith.constant 0 : i32
    %c0_i32_0 = arith.constant 0 : i32
    return %arg0, %c0_i32 : i32, i32
  }
  func.func @transform_1(%arg0: i32) -> (i32, i32) {
    %c0_i32 = arith.constant 0 : i32
    %c0_i32_0 = arith.constant 0 : i32
    %c0_i32_1 = arith.constant 0 : i32
    return %c0_i32, %c0_i32_0 : i32, i32
  }
  func.func @transform_2(%arg0: i32) -> (i32, i32) {
    %c0_i32 = arith.constant 0 : i32
    %c0_i32_0 = arith.constant 0 : i32
    %c0_i32_1 = arith.constant 0 : i32
    return %c0_i32, %c0_i32_0 : i32, i32
  }
  func.func @transform_3(%arg0: i32) -> (i32, i32) {
    %c0_i32 = arith.constant 0 : i32
    %c0_i32_0 = arith.constant 0 : i32
    %c0_i32_1 = arith.constant 0 : i32
    return %c0_i32, %c0_i32_0 : i32, i32
  }
  func.func @transform_4(%arg0: i32) -> (i32, i32) {
    %c0_i32 = arith.constant 0 : i32
    %c0_i32_0 = arith.constant 0 : i32
    %c0_i32_1 = arith.constant 0 : i32
    return %c0_i32, %c0_i32_0 : i32, i32
  }
  func.func @transform_5(%arg0: i32) -> (i32, i32) {
    %c0_i32 = arith.constant 0 : i32
    %c0_i32_0 = arith.constant 0 : i32
    %c0_i32_1 = arith.constant 0 : i32
    return %c0_i32, %c0_i32_0 : i32, i32
  }
  func.func @transform_6(%arg0: i32) -> (i32, i32) {
    %c0_i32 = arith.constant 0 : i32
    %c0_i32_0 = arith.constant 0 : i32
    %c0_i32_1 = arith.constant 0 : i32
    return %c0_i32, %c0_i32_0 : i32, i32
  }
  func.func @transform_7(%arg0: i32) -> (i32, i32) {
    %c0_i32 = arith.constant 0 : i32
    %c0_i32_0 = arith.constant 0 : i32
    %c0_i32_1 = arith.constant 0 : i32
    return %c0_i32, %c0_i32_0 : i32, i32
  }
  func.func @transform_8(%arg0: i32) -> (i32, i32) {
    %c0_i32 = arith.constant 0 : i32
    %c0_i32_0 = arith.constant 0 : i32
    %c0_i32_1 = arith.constant 0 : i32
    return %c0_i32, %c0_i32_0 : i32, i32
  }
  func.func @transform_9(%arg0: i32) -> (i32, i32) {
    %c0_i32 = arith.constant 0 : i32
    %c0_i32_0 = arith.constant 0 : i32
    return %arg0, %c0_i32 : i32, i32
  }
}

</mosaic_0001>

<llo_original>
// kernel: tpu_custom_call.1
$region0: #{tpu_custom_call.1}
  #allocation0 [shape = 'u32[]', space=smem, size = 0x4, offset = 0x4, fixed_abs, tag = 'smem constant byte address 0x4 - core index']
  #allocation1 [shape = 'u32[144,128]{1,0:T(1,128)}', space=vmem, size = 0x12000, scoped, tag = 'internal scratch']
  %s0 = inlined_call_operand.vmem [shape: bf16[8,49], index: 0, kind: input, shape index: {}]
  %s1 = inlined_call_operand.vmem [shape: bf16[49,64], index: 1, kind: input, shape index: {}]
  %s2 = inlined_call_operand.vmem [shape: f32[1,64], index: 2, kind: input, shape index: {}]
  %s3 = inlined_call_operand.vmem [shape: bf16[64,32], index: 3, kind: input, shape index: {}]
  %s4 = inlined_call_operand.vmem [shape: f32[1,32], index: 4, kind: input, shape index: {}]
  %s5 = inlined_call_operand.vmem [shape: bf16[32,16], index: 5, kind: input, shape index: {}]
  %s6 = inlined_call_operand.vmem [shape: f32[1,16], index: 6, kind: input, shape index: {}]
  %s7 = inlined_call_operand.vmem [shape: bf16[16,30], index: 7, kind: input, shape index: {}]
  %s8 = inlined_call_operand.vmem [shape: f32[1,30], index: 8, kind: input, shape index: {}]
  %s9 = inlined_call_operand.hbm [shape: f32[8,30], index: 9, kind: output, shape index: {}]
  %s10 = sld [smem:[#allocation0]]
  $region46: #{tpu_custom_call.1} parent=0
    _
  %s12 = ssub.s32 1, %s10
  %s13 = scalar_select 0, %s12, %s10
  $region1: #{tpu_custom_call.1} parent=0
    #allocation2 [shape = 'u8[4096]{0}', space=vmem, size = 0x1000, scoped, tag = 'output window, operand 0, single buffered']
    #allocation3 [shape = 's32[1]{0}', space=sflag, size = 0x4, scoped, tag = 'scoped memory for tpu_custom_call.1']
    %14 = vsyncpa [#allocation3], 0
    // Predicated region
    $region2: #{tpu_custom_call.1} parent=1 // pred_check
      _
    $region3: #{tpu_custom_call.1} parent=1 // pred_check_branch
      %16 = sbr.rel (0) target = $region5
    $region4: #{tpu_custom_call.1} parent=1 // pred_region
      _
    $region5: #{tpu_custom_call.1} parent=1 // pred_fallthru
      _
    // Predicated region
    $region6: #{tpu_custom_call.1} parent=1 // pred_check
      _
    $region7: #{tpu_custom_call.1} parent=1 // pred_check_branch
      %18 = sbr.rel (0) target = $region9
    $region8: #{tpu_custom_call.1} parent=1 // pred_region
      _
    $region9: #{tpu_custom_call.1} parent=1 // pred_fallthru
      _
    // Predicated region
    $region10: #{tpu_custom_call.1} parent=1 // pred_check
      _
    $region11: #{tpu_custom_call.1} parent=1 // pred_check_branch
      %20 = sbr.rel (0) target = $region13
    $region12: #{tpu_custom_call.1} parent=1 // pred_region
      _
    $region13: #{tpu_custom_call.1} parent=1 // pred_fallthru
      _
    // Predicated region
    $region14: #{tpu_custom_call.1} parent=1 // pred_check
      _
    $region15: #{tpu_custom_call.1} parent=1 // pred_check_branch
      %22 = sbr.rel (0) target = $region17
    $region16: #{tpu_custom_call.1} parent=1 // pred_region
      _
    $region17: #{tpu_custom_call.1} parent=1 // pred_fallthru
      _
    // Predicated region
    $region18: #{tpu_custom_call.1} parent=1 // pred_check
      _
    $region19: #{tpu_custom_call.1} parent=1 // pred_check_branch
      %24 = sbr.rel (0) target = $region21
    $region20: #{tpu_custom_call.1} parent=1 // pred_region
      _
    $region21: #{tpu_custom_call.1} parent=1 // pred_fallthru
      _
    // Predicated region
    $region22: #{tpu_custom_call.1} parent=1 // pred_check
      _
    $region23: #{tpu_custom_call.1} parent=1 // pred_check_branch
      %26 = sbr.rel (0) target = $region25
    $region24: #{tpu_custom_call.1} parent=1 // pred_region
      _
    $region25: #{tpu_custom_call.1} parent=1 // pred_fallthru
      _
    // Predicated region
    $region26: #{tpu_custom_call.1} parent=1 // pred_check
      _
    $region27: #{tpu_custom_call.1} parent=1 // pred_check_branch
      %28 = sbr.rel (0) target = $region29
    $region28: #{tpu_custom_call.1} parent=1 // pred_region
      _
    $region29: #{tpu_custom_call.1} parent=1 // pred_fallthru
      _
    // Predicated region
    $region30: #{tpu_custom_call.1} parent=1 // pred_check
      _
    $region31: #{tpu_custom_call.1} parent=1 // pred_check_branch
      %30 = sbr.rel (0) target = $region33
    $region32: #{tpu_custom_call.1} parent=1 // pred_region
      _
    $region33: #{tpu_custom_call.1} parent=1 // pred_fallthru
      _
    // Predicated region
    $region34: #{tpu_custom_call.1} parent=1 // pred_check
      _
    $region35: #{tpu_custom_call.1} parent=1 // pred_check_branch
      %32 = sbr.rel (0) target = $region37
    $region36: #{tpu_custom_call.1} parent=1 // pred_region
      _
    $region37: #{tpu_custom_call.1} parent=1 // pred_fallthru
      _
    %v34 = vld [vmem:[%s0] sm:$0xf]
    %v35 = vld [vmem:[%s1] sm:$0xf]
    %v36 = vld [vmem:[%s1 + $0x4] sm:$0xf]
    %v37 = vld [vmem:[%s1 + $0x8] sm:$0xf]
    %v38 = vld [vmem:[%s1 + $0xc] sm:$0xf]
    %v39 = vld [vmem:[%s1 + $0x10] sm:$0xf]
    %v40 = vld [vmem:[%s1 + $0x14] sm:$0xf]
    %v41 = vld [vmem:[%s1 + $0x18] sm:$0x1]
    %v42 = vld [vmem:[%s2] sm:$0x1]
    %v44 = vlaneseq
    %v45 = vshrl.u32 %v44, 7
    %v46 = vsub.s32 0, %v45
    %v47 = vrot.slane %v42, %v46
    %v56 = vunpack.c.l.b16 %v35
    %v57 = vunpack.c.l.b16 %v36
    %v58 = vunpack.c.l.b16 %v37
    %v59 = vunpack.c.l.b16 %v38
    %v60 = vunpack.c.l.b16 %v39
    %v61 = vunpack.c.l.b16 %v40
    %v62 = vunpack.c.l.b16 %v41
    %v63 = vpack.c.b16 %v57, %v56
    %v64 = vpack.c.b16 %v59, %v58
    %v65 = vpack.c.b16 %v61, %v60
    %v66 = vpack.c.b16 %v62, %v62
    %vm70 = vcmask 400384
    %v72 = vsel %vm70, %v34, 0
    %vm74 = vcmask 1040384
    %v75 = vsel 0, 4294967295, 65535
    %v76 = vsel %vm74, %v75, 0
    %v78 = vand.u32 %v66, %v76
    %80 = vmatprep.subr.bf16.mxu0 0
    %81 = vmatpush1.bf16.msra.mxu0 %v63
    %82 = vmatprep.subr.bf16.mxu0 0
    %83 = vmatpush1.bf16.msra.mxu0 %v64
    %84 = vmatprep.subr.bf16.mxu0 0
    %85 = vmatpush1.bf16.msra.mxu0 %v65
    %86 = vmatprep.subr.bf16.mxu0 0
    %87 = vmatpush1.bf16.msra.mxu0 %v78
    %88 = vmatprep.subr.bf16.mxu0 0
    %89 = vmatpush1.bf16.msra.mxu0 0
    %90 = vmatprep.subr.bf16.mxu0 0
    %91 = vmatpush1.bf16.msra.mxu0 0
    %92 = vmatprep.subr.bf16.mxu0 0
    %93 = vmatpush1.bf16.msra.mxu0 0
    %94 = vmatprep.subr.bf16.mxu0 0
    %95 = vmatpush1.bf16.msra.mxu0 0
    %96 = vmatprep.subr.bf16.mxu0 0
    %97 = vmatpush1.bf16.msra.mxu0 0
    %98 = vmatprep.subr.bf16.mxu0 0
    %99 = vmatpush1.bf16.msra.mxu0 0
    %100 = vmatprep.subr.bf16.mxu0 0
    %101 = vmatpush1.bf16.msra.mxu0 0
    %102 = vmatprep.subr.bf16.mxu0 0
    %103 = vmatpush1.bf16.msra.mxu0 0
    %104 = vmatprep.subr.bf16.mxu0 0
    %105 = vmatpush1.bf16.msra.mxu0 0
    %106 = vmatprep.subr.bf16.mxu0 0
    %107 = vmatpush1.bf16.msra.mxu0 0
    %108 = vmatprep.subr.bf16.mxu0 0
    %109 = vmatpush1.bf16.msra.mxu0 0
    %110 = vmatprep.subr.bf16.mxu0 0
    %111 = vmatpush1.bf16.msra.mxu0 0
    %112 = vmatprep.mubr.bf16.mxu0 0
    %113 = vmatmul.mubr.bf16.gmra.mrb[0].mxu0 %v72
    %v114 = vpop.f32.mrb[0].mxu0
    %v115 = vadd.f32 %v47, %v114
    %v116 = vpop.f32.mrb[0].mxu0
    %v117 = vpop.f32.mrb[0].mxu0
    %v118 = vpop.f32.mrb[0].mxu0
    %119 = vdwg.mxu0
    %v120 = vmax.f32 %v115, 0.0
    %v121 = vpack.c.bf16 %v120, %v120
    %v122 = vld [vmem:[%s3] sm:$0xf]
    %v123 = vld [vmem:[%s3 + $0x4] sm:$0xf]
    %v124 = vld [vmem:[%s3 + $0x8] sm:$0xf]
    %v125 = vld [vmem:[%s3 + $0xc] sm:$0xf]
    %v126 = vld [vmem:[%s3 + $0x10] sm:$0xf]
    %v127 = vld [vmem:[%s3 + $0x14] sm:$0xf]
    %v128 = vld [vmem:[%s3 + $0x18] sm:$0xf]
    %v129 = vld [vmem:[%s3 + $0x1c] sm:$0xf]
    %v130 = vld [vmem:[%s4] sm:$0x1]
    %v132 = vlaneseq
    %v133 = vshrl.u32 %v132, 7
    %v134 = vsub.s32 0, %v133
    %v135 = vrot.slane %v130, %v134
    %v145 = vunpack.c.l.b16 %v122
    %v146 = vunpack.c.l.b16 %v123
    %v147 = vunpack.c.l.b16 %v124
    %v148 = vunpack.c.l.b16 %v125
    %v149 = vunpack.c.l.b16 %v126
    %v150 = vunpack.c.l.b16 %v127
    %v151 = vunpack.c.l.b16 %v128
    %v152 = vunpack.c.l.b16 %v129
    %v153 = vpack.c.b16 %v146, %v145
    %v154 = vpack.c.b16 %v148, %v147
    %v155 = vpack.c.b16 %v150, %v149
    %v156 = vpack.c.b16 %v152, %v151
    %vm161 = vcmask 523264
    %v163 = vsel %vm161, %v121, 0
    %165 = vmatprep.subr.bf16.mxu0 0
    %166 = vmatpush1.bf16.msra.mxu0 %v153
    %167 = vmatprep.subr.bf16.mxu0 0
    %168 = vmatpush1.bf16.msra.mxu0 %v154
    %169 = vmatprep.subr.bf16.mxu0 0
    %170 = vmatpush1.bf16.msra.mxu0 %v155
    %171 = vmatprep.subr.bf16.mxu0 0
    %172 = vmatpush1.bf16.msra.mxu0 %v156
    %173 = vmatprep.subr.bf16.mxu0 0
    %174 = vmatpush1.bf16.msra.mxu0 0
    %175 = vmatprep.subr.bf16.mxu0 0
    %176 = vmatpush1.bf16.msra.mxu0 0
    %177 = vmatprep.subr.bf16.mxu0 0
    %178 = vmatpush1.bf16.msra.mxu0 0
    %179 = vmatprep.subr.bf16.mxu0 0
    %180 = vmatpush1.bf16.msra.mxu0 0
    %181 = vmatprep.subr.bf16.mxu0 0
    %182 = vmatpush1.bf16.msra.mxu0 0
    %183 = vmatprep.subr.bf16.mxu0 0
    %184 = vmatpush1.bf16.msra.mxu0 0
    %185 = vmatprep.subr.bf16.mxu0 0
    %186 = vmatpush1.bf16.msra.mxu0 0
    %187 = vmatprep.subr.bf16.mxu0 0
    %188 = vmatpush1.bf16.msra.mxu0 0
    %189 = vmatprep.subr.bf16.mxu0 0
    %190 = vmatpush1.bf16.msra.mxu0 0
    %191 = vmatprep.subr.bf16.mxu0 0
    %192 = vmatpush1.bf16.msra.mxu0 0
    %193 = vmatprep.subr.bf16.mxu0 0
    %194 = vmatpush1.bf16.msra.mxu0 0
    %195 = vmatprep.subr.bf16.mxu0 0
    %196 = vmatpush1.bf16.msra.mxu0 0
    %197 = vmatprep.mubr.bf16.mxu0 0
    %198 = vmatmul.mubr.bf16.gmra.mrb[0].mxu0 %v163
    %v199 = vpop.f32.mrb[0].mxu0
    %v200 = vadd.f32 %v135, %v199
    %v201 = vpop.f32.mrb[0].mxu0
    %v202 = vpop.f32.mrb[0].mxu0
    %v203 = vpop.f32.mrb[0].mxu0
    %204 = vdwg.mxu0
    %v205 = vmax.f32 %v200, 0.0
    %v206 = vpack.c.bf16 %v205, %v205
    %v207 = vld [vmem:[%s5] sm:$0xf]
    %v208 = vld [vmem:[%s5 + $0x4] sm:$0xf]
    %v209 = vld [vmem:[%s5 + $0x8] sm:$0xf]
    %v210 = vld [vmem:[%s5 + $0xc] sm:$0xf]
    %v211 = vld [vmem:[%s6] sm:$0x1]
    %v213 = vlaneseq
    %v214 = vshrl.u32 %v213, 7
    %v215 = vsub.s32 0, %v214
    %v216 = vrot.slane %v211, %v215
    %v222 = vunpack.c.l.b16 %v207
    %v223 = vunpack.c.l.b16 %v208
    %v224 = vunpack.c.l.b16 %v209
    %v225 = vunpack.c.l.b16 %v210
    %v226 = vpack.c.b16 %v223, %v222
    %v227 = vpack.c.b16 %v225, %v224
    %vm230 = vcmask 261120
    %v232 = vsel %vm230, %v206, 0
    %234 = vmatprep.subr.bf16.mxu0 0
    %235 = vmatpush1.bf16.msra.mxu0 %v226
    %236 = vmatprep.subr.bf16.mxu0 0
    %237 = vmatpush1.bf16.msra.mxu0 %v227
    %238 = vmatprep.subr.bf16.mxu0 0
    %239 = vmatpush1.bf16.msra.mxu0 0
    %240 = vmatprep.subr.bf16.mxu0 0
    %241 = vmatpush1.bf16.msra.mxu0 0
    %242 = vmatprep.subr.bf16.mxu0 0
    %243 = vmatpush1.bf16.msra.mxu0 0
    %244 = vmatprep.subr.bf16.mxu0 0
    %245 = vmatpush1.bf16.msra.mxu0 0
    %246 = vmatprep.subr.bf16.mxu0 0
    %247 = vmatpush1.bf16.msra.mxu0 0
    %248 = vmatprep.subr.bf16.mxu0 0
    %249 = vmatpush1.bf16.msra.mxu0 0
    %250 = vmatprep.subr.bf16.mxu0 0
    %251 = vmatpush1.bf16.msra.mxu0 0
    %252 = vmatprep.subr.bf16.mxu0 0
    %253 = vmatpush1.bf16.msra.mxu0 0
    %254 = vmatprep.subr.bf16.mxu0 0
    %255 = vmatpush1.bf16.msra.mxu0 0
    %256 = vmatprep.subr.bf16.mxu0 0
    %257 = vmatpush1.bf16.msra.mxu0 0
    %258 = vmatprep.subr.bf16.mxu0 0
    %259 = vmatpush1.bf16.msra.mxu0 0
    %260 = vmatprep.subr.bf16.mxu0 0
    %261 = vmatpush1.bf16.msra.mxu0 0
    %262 = vmatprep.subr.bf16.mxu0 0
    %263 = vmatpush1.bf16.msra.mxu0 0
    %264 = vmatprep.subr.bf16.mxu0 0
    %265 = vmatpush1.bf16.msra.mxu0 0
    %266 = vmatprep.mubr.bf16.mxu0 0
    %267 = vmatmul.mubr.bf16.gmra.mrb[0].mxu0 %v232
    %v268 = vpop.f32.mrb[0].mxu0
    %v269 = vadd.f32 %v216, %v268
    %v270 = vpop.f32.mrb[0].mxu0
    %v271 = vpop.f32.mrb[0].mxu0
    %v272 = vpop.f32.mrb[0].mxu0
    %273 = vdwg.mxu0
    %v274 = vmax.f32 %v269, 0.0
    %v275 = vpack.c.bf16 %v274, %v274
    %v276 = vld [vmem:[%s7] sm:$0xf]
    %v277 = vld [vmem:[%s7 + $0x4] sm:$0xf]
    %v278 = vld [vmem:[%s8] sm:$0x1]
    %v280 = vlaneseq
    %v281 = vshrl.u32 %v280, 7
    %v282 = vsub.s32 0, %v281
    %v283 = vrot.slane %v278, %v282
    %v287 = vunpack.c.l.b16 %v276
    %v288 = vunpack.c.l.b16 %v277
    %v289 = vpack.c.b16 %v288, %v287
    %vm291 = vcmask 130048
    %v293 = vsel %vm291, %v275, 0
    %295 = vmatprep.subr.bf16.mxu0 0
    %296 = vmatpush1.bf16.msra.mxu0 %v289
    %297 = vmatprep.subr.bf16.mxu0 0
    %298 = vmatpush1.bf16.msra.mxu0 0
    %299 = vmatprep.subr.bf16.mxu0 0
    %300 = vmatpush1.bf16.msra.mxu0 0
    %301 = vmatprep.subr.bf16.mxu0 0
    %302 = vmatpush1.bf16.msra.mxu0 0
    %303 = vmatprep.subr.bf16.mxu0 0
    %304 = vmatpush1.bf16.msra.mxu0 0
    %305 = vmatprep.subr.bf16.mxu0 0
    %306 = vmatpush1.bf16.msra.mxu0 0
    %307 = vmatprep.subr.bf16.mxu0 0
    %308 = vmatpush1.bf16.msra.mxu0 0
    %309 = vmatprep.subr.bf16.mxu0 0
    %310 = vmatpush1.bf16.msra.mxu0 0
    %311 = vmatprep.subr.bf16.mxu0 0
    %312 = vmatpush1.bf16.msra.mxu0 0
    %313 = vmatprep.subr.bf16.mxu0 0
    %314 = vmatpush1.bf16.msra.mxu0 0
    %315 = vmatprep.subr.bf16.mxu0 0
    %316 = vmatpush1.bf16.msra.mxu0 0
    %317 = vmatprep.subr.bf16.mxu0 0
    %318 = vmatpush1.bf16.msra.mxu0 0
    %319 = vmatprep.subr.bf16.mxu0 0
    %320 = vmatpush1.bf16.msra.mxu0 0
    %321 = vmatprep.subr.bf16.mxu0 0
    %322 = vmatpush1.bf16.msra.mxu0 0
    %323 = vmatprep.subr.bf16.mxu0 0
    %324 = vmatpush1.bf16.msra.mxu0 0
    %325 = vmatprep.subr.bf16.mxu0 0
    %326 = vmatpush1.bf16.msra.mxu0 0
    %327 = vmatprep.mubr.bf16.mxu0 0
    %328 = vmatmul.mubr.bf16.gmra.mrb[0].mxu0 %v293
    %v329 = vpop.f32.mrb[0].mxu0
    %v330 = vadd.f32 %v283, %v329
    %v331 = vpop.f32.mrb[0].mxu0
    %v332 = vpop.f32.mrb[0].mxu0
    %v333 = vpop.f32.mrb[0].mxu0
    %334 = vdwg.mxu0
    %vm335 = vcmask 244736
    %336 = vst.msk [vmem:[#allocation2] sm:$0xff] %vm335, %v330
    // Predicated region
    $region38: #{tpu_custom_call.1} parent=1 // pred_check
      _
    $region39: #{tpu_custom_call.1} parent=1 // pred_check_branch
      %338 = sbr.rel (0) target = $region41
    $region40: #{tpu_custom_call.1} parent=1 // pred_region
      %s340 = ssub.s32 128, 128
      %341 = vsyncadd [#allocation3], %s340
      %s343 = sshll.u32 [#allocation2], 4
      %s344 = int_to_ptr.vmem [resolvable:$true] %s343
      %346 = dma.vmem_to_hbm [thread:$0]  %s344, 128, %s9, [#allocation3]
    $region41: #{tpu_custom_call.1} parent=1 // pred_fallthru
      _
    // Predicated region
    $region42: #{tpu_custom_call.1} parent=1 // pred_check
      _
    $region43: #{tpu_custom_call.1} parent=1 // pred_check_branch
      %348 = sbr.rel (0) target = $region45
    $region44: #{tpu_custom_call.1} parent=1 // pred_region
      %349 = dma.done [#allocation3], 128
    $region45: #{tpu_custom_call.1} parent=1 // pred_fallthru
      _
    %350 = vsyncpa [#allocation3], 1

</llo_original>
